<compile_context>
chip_gen: v5e
topology: v5e:2x2
jax: 0.10.0
libtpu: 0.0.40
codegen_flags: <defaults>
</compile_context>

<pallas_src>
import functools
import math

import jax
import jax.numpy as jnp
from jax.experimental import pallas as pl
from jax.experimental.pallas import tpu as pltpu

EPS = 1e-07        # eps used by contrast_loss in the PyTorch module
NORM_EPS = 1e-12   # F.normalize default eps
VMEM_LIMIT = 48 * 1024 * 1024


def _round_up(x, m):
    return (x + m - 1) // m * m


def _cdiv(a, b):
    return (a + b - 1) // b


# ---------------------------------------------------------------------------
# Projection kernel: Flatten -> Linear -> F.normalize, emitted as bf16.
# ---------------------------------------------------------------------------
def _embed_kernel(f_ref, w_ref, b_ref, o_ref):
    e = jnp.dot(f_ref[...], w_ref[...],
                preferred_element_type=jnp.float32) + b_ref[...]
    e = e * jax.lax.rsqrt(
        jnp.maximum(jnp.sum(e * e, axis=-1, keepdims=True),
                    NORM_EPS * NORM_EPS))
    o_ref[...] = e.astype(o_ref.dtype)


def _embed(f, w, b, *, bm):
    # TODO(synk): for very large flattened feature dims this should K-tile the
    # contraction; kept single-slab since it runs once per batch.
    rows, in_dim = f.shape
    feat_dim = w.shape[1]
    return pl.pallas_call(
        _embed_kernel,
        out_shape=jax.ShapeDtypeStruct((rows, feat_dim), jnp.bfloat16),
        grid_spec=pltpu.PrefetchScalarGridSpec(
            num_scalar_prefetch=0,
            grid=(rows // bm,),
            in_specs=[
                pl.BlockSpec((bm, in_dim), lambda i: (i, 0)),
                pl.BlockSpec((in_dim, feat_dim), lambda i: (0, 0)),
                pl.BlockSpec((1, feat_dim), lambda i: (0, 0)),
            ],
            out_specs=pl.BlockSpec((bm, feat_dim), lambda i: (i, 0)),
        ),
        compiler_params=pltpu.CompilerParams(
            dimension_semantics=("parallel",),
            vmem_limit_bytes=VMEM_LIMIT),
    )(f, w, b)


# ---------------------------------------------------------------------------
# Main kernel: stream bank slabs, score on MXU, accumulate contrast-loss terms.
# ---------------------------------------------------------------------------
def _crd_loss_kernel(idx_ref, es_ref, et_ref, mt_ref, ms_ref, cnt_ref,
                     out_ref, acc_sc, *, inv_T, ln_invZ, m_eps):
    k = pl.program_id(2)

    @pl.when(k == 0)
    def _init():
        acc_sc[...] = jnp.zeros_like(acc_sc)

    bm, kt = cnt_ref.shape

    # MXU: [bm, feat] @ [feat, kt] -> [bm, kt]  (canonical feed, kt lane-dense)
    s_s = jnp.dot(es_ref[...], mt_ref[...], preferred_element_type=jnp.float32)
    s_t = jnp.dot(et_ref[...], ms_ref[...], preferred_element_type=jnp.float32)

    a_s = s_s * inv_T + ln_invZ          # = log(p_s),  p_s = exp(score/T)/Z
    a_t = s_t * inv_T + ln_invZ
    p_s = jnp.exp(a_s)
    p_t = jnp.exp(a_t)

    # positive one-hot from idx (lane iota compare); negative multiplicities
    # streamed as int8 and widened here.
    kk = pl.program_id(1) * pl.num_programs(2) + k
    col = kk * kt + jax.lax.broadcasted_iota(jnp.int32, (bm, kt), 1)
    pos = (col == idx_ref[...]).astype(jnp.float32)
    cnt = cnt_ref[...].astype(jnp.float32)

    # contrast_loss terms with constants folded out (K*log(residual) re-added in
    # the wrapper); the two logs are fused into a single EUP log.
    log_den = jnp.log((p_s + m_eps) * (p_t + m_eps))
    term = pos * (a_s + a_t) - (pos + cnt) * log_den        # [bm, kt]

    # lane-dense accumulation: static VPU adds over aligned 128-lane slabs.
    part = term[:, 0:128]
    for g in range(1, kt // 128):
        part = part + term[:, g * 128:(g + 1) * 128]
    acc_sc[...] += part

    @pl.when(k == pl.num_programs(2) - 1)
    def _done():
        out_ref[...] = acc_sc[...]


def crd_loss(f_s, f_t, idx, contrast_idx, params, memory_s, memory_t,
             *, nce_k, n_data, T=0.07, bm=None, kt=1024):
    """f_s/f_t: NCHW (or already-flat) features; idx: [B] positive indices;
    contrast_idx: [B, K] negative indices (must contain negatives only).

    kt: memory-bank slab width along the negatives axis (sweep 512/1024/2048).
    bm: batch tile; defaults to the whole (padded) batch, up to 256 rows.
    """
    B = f_s.shape[0]
    fs = f_s.reshape(B, -1)                                   # nn.Flatten
    ft = f_t.reshape(B, -1)
    s_dim, t_dim = fs.shape[1], ft.shape[1]
    feat_dim = memory_s.shape[-1]

    if bm is None:
        bm = min(_round_up(B, 32), 256)
    bm = _round_up(bm, 32)                  # int8 counts want (32, 128) tiles
    B_pad = _round_up(B, bm)
    n_btiles = B_pad // bm

    fd_pad = _round_up(feat_dim, 128)
    s_pad = _round_up(s_dim, 128)
    t_pad = _round_up(t_dim, 128)

    kt = max(128, _round_up(min(kt, _round_up(n_data, 128)), 128))
    n_ktiles = _cdiv(n_data, kt)
    # v7x has 2 TensorCores: if the whole batch fits one tile, split the
    # reduction range into two parallel halves so both cores get work.
    n_splits = 2 if (n_btiles == 1 and n_ktiles >= 2) else 1
    n_ktiles = _round_up(n_ktiles, n_splits)
    nks = n_ktiles // n_splits
    n_pad = n_ktiles * kt

    def pad2(x, rows, cols):
        return jnp.pad(x, ((0, rows - x.shape[0]), (0, cols - x.shape[1])))

    # ---- projections (hoisted out of the streaming loop) ----
    fs_p = pad2(fs.astype(jnp.bfloat16), B_pad, s_pad)
    ft_p = pad2(ft.astype(jnp.bfloat16), B_pad, t_pad)
    ws = pad2(params["ws"].astype(jnp.bfloat16), s_pad, fd_pad)
    wt = pad2(params["wt"].astype(jnp.bfloat16), t_pad, fd_pad)
    bs = pad2(params["bs"].reshape(1, -1).astype(jnp.float32), 1, fd_pad)
    bt = pad2(params["bt"].reshape(1, -1).astype(jnp.float32), 1, fd_pad)
    es = _embed(fs_p, ws, bs, bm=bm)          # [B_pad, fd_pad] bf16, normalized
    et = _embed(ft_p, wt, bt, bm=bm)

    # ---- memory banks, pre-transposed to [feat_dim, n] bf16 (one-time cost) ----
    mem_t_T = pad2(memory_t.astype(jnp.bfloat16), n_pad, fd_pad).T
    mem_s_T = pad2(memory_s.astype(jnp.bfloat16), n_pad, fd_pad).T

    # positive index per row (-1 on padded rows => never matches the iota)
    idx_p = jnp.full((B_pad, 1), -1, jnp.int32)
    idx_p = idx_p.at[:B, 0].set(idx.astype(jnp.int32))

    # dense negative-multiplicity matrix (handles repeated indices exactly),
    # streamed as int8 to quarter its HBM traffic inside the kernel.
    # TODO(synk): when n_data >> nce_k a gathered-negatives kernel (scalar-prefetch
    # contrast_idx + per-row bank gather) avoids the dense O(B*n_data) scoring/scatter.
    rows = jnp.broadcast_to(jnp.arange(B, dtype=jnp.int32)[:, None],
                            contrast_idx.shape)
    counts = jnp.zeros((B_pad, n_pad), jnp.int32)
    counts = counts.at[rows, contrast_idx.astype(jnp.int32)].add(1)
    counts = counts.astype(jnp.int8)

    residual = float(nce_k) / float(n_data)
    Z = float(n_data)   # TODO(synk): reference estimates Z from the first batch.
    kernel = functools.partial(_crd_loss_kernel,
                               inv_T=1.0 / float(T),
                               ln_invZ=-math.log(Z),
                               m_eps=residual + EPS)

    grid_spec = pltpu.PrefetchScalarGridSpec(
        num_scalar_prefetch=0,
        grid=(n_btiles, n_splits, nks),
        in_specs=[
            pl.BlockSpec((bm, 1), lambda b, s, k: (b, 0)),                 # idx
            pl.BlockSpec((bm, fd_pad), lambda b, s, k: (b, 0)),            # es
            pl.BlockSpec((bm, fd_pad), lambda b, s, k: (b, 0)),            # et
            pl.BlockSpec((fd_pad, kt), lambda b, s, k: (0, s * nks + k)),  # memory_t^T
            pl.BlockSpec((fd_pad, kt), lambda b, s, k: (0, s * nks + k)),  # memory_s^T
            pl.BlockSpec((bm, kt), lambda b, s, k: (b, s * nks + k)),      # counts (i8)
        ],
        out_specs=pl.BlockSpec((bm, 128), lambda b, s, k: (b, s)),         # partials
        scratch_shapes=[pltpu.VMEM((bm, 128), jnp.float32)],
    )

    out = pl.pallas_call(
        kernel,
        out_shape=jax.ShapeDtypeStruct((B_pad, n_splits * 128), jnp.float32),
        grid_spec=grid_spec,
        compiler_params=pltpu.CompilerParams(
            dimension_semantics=("parallel", "parallel", "arbitrary"),
            vmem_limit_bytes=VMEM_LIMIT),
    )(idx_p, es, et, mem_t_T, mem_s_T, counts)

    per_row = jnp.sum(out[:B], axis=-1)
    # add back the folded-out constant K*log(residual) per side, mean over batch, negate
    loss = -(jnp.mean(per_row) + 2.0 * float(nce_k) * math.log(residual))
    return loss


if __name__ == "__main__":
    key = jax.random.PRNGKey(0)

    # small, TPU-friendly shapes consistent with the module's forward
    B = 8
    C_s, H_s, W_s = 4, 16, 16          # s_dim = 1024
    C_t, H_t, W_t = 8, 8, 8            # t_dim = 512
    feat_dim = 128
    nce_k = 16
    n_data = 400                       # pads to 512 -> multiple k slabs at kt=128
    s_dim = C_s * H_s * W_s
    t_dim = C_t * H_t * W_t

    ks = jax.random.split(key, 10)
    f_s = jax.random.normal(ks[0], (B, C_s, H_s, W_s), jnp.float32)
    f_t = jax.random.normal(ks[1], (B, C_t, H_t, W_t), jnp.float32)

    # deterministic parameter init (PyTorch-Linear-style uniform), weights stored
    # transposed as [in_dim, feat_dim] so the kernel does f @ W
    lim_s = 1.0 / (s_dim ** 0.5)
    ws = jax.random.uniform(ks[2], (s_dim, feat_dim), jnp.float32, -lim_s, lim_s)
    bs = jax.random.uniform(ks[3], (1, feat_dim), jnp.float32, -lim_s, lim_s)
    lim_t = 1.0 / (t_dim ** 0.5)
    wt = jax.random.uniform(ks[4], (t_dim, feat_dim), jnp.float32, -lim_t, lim_t)
    bt = jax.random.uniform(ks[5], (1, feat_dim), jnp.float32, -lim_t, lim_t)

    # contrastive memory banks (standard CRD uniform init, n_data x feat_dim)
    stdv = 1.0 / ((feat_dim / 3.0) ** 0.5)
    memory_s = jax.random.uniform(ks[6], (n_data, feat_dim), jnp.float32, -stdv, stdv)
    memory_t = jax.random.uniform(ks[7], (n_data, feat_dim), jnp.float32, -stdv, stdv)

    idx = jax.random.randint(ks[8], (B,), 0, n_data)
    contrast_idx = jax.random.randint(ks[9], (B, nce_k), 0, n_data)

    params = {"ws": ws, "bs": bs, "wt": wt, "bt": bt}
    # kt=128 at this toy n_data exercises multi-slab accumulation and the two-way
    # k-split (both v7x TensorCores); production default is kt=1024.
    loss = crd_loss(f_s, f_t, idx, contrast_idx, params, memory_s, memory_t,
                    nce_k=nce_k, n_data=n_data, kt=128)
    loss = jax.block_until_ready(loss)
    assert jnp.isfinite(loss), "loss is not finite"
    print("KERNEL_OK")
</pallas_src>

<mosaic_0001>
module attributes {stable_mosaic.version = 11 : i64} {
  func.func @_embed_kernel(%arg0: i32, %arg1: memref<32x1024xbf16, #tpu.memory_space<vmem>>, %arg2: memref<1024x128xbf16, #tpu.memory_space<vmem>>, %arg3: memref<1x128xf32, #tpu.memory_space<vmem>>, %arg4: memref<32x128xbf16, #tpu.memory_space<vmem>>) attributes {dimension_semantics = [#tpu.dimension_semantics<parallel>], iteration_bounds = array<i64: 1>, scalar_prefetch = 0 : i64, scratch_operands = 0 : i64, tpu.core_type = #tpu.core_type<tc>, window_params = [{transform_indices = @transform_0, window_bounds = array<i64: 32, 1024>}, {pipeline_mode = #tpu.pipeline_mode<synchronous>, transform_indices = @transform_1, window_bounds = array<i64: 1024, 128>}, {pipeline_mode = #tpu.pipeline_mode<synchronous>, transform_indices = @transform_2, window_bounds = array<i64: 1, 128>}, {transform_indices = @transform_3, window_bounds = array<i64: 32, 128>}]} {
    %c0 = arith.constant 0 : index
    %c0_0 = arith.constant 0 : index
    %0 = vector.load %arg1[%c0, %c0_0] : memref<32x1024xbf16, #tpu.memory_space<vmem>>, vector<32x1024xbf16>
    %c0_1 = arith.constant 0 : index
    %c0_2 = arith.constant 0 : index
    %1 = vector.load %arg2[%c0_1, %c0_2] : memref<1024x128xbf16, #tpu.memory_space<vmem>>, vector<1024x128xbf16>
    %cst = arith.constant dense<0.000000e+00> : vector<32x128xf32>
    %2 = tpu.matmul %0, %1, %cst {dimension_numbers = #tpu.dot_dimension_numbers<[1], [0], [0], [1], [0, 0, 1, 1], [], []>} : vector<32x1024xbf16>, vector<1024x128xbf16>, vector<32x128xf32> -> vector<32x128xf32>
    %c0_3 = arith.constant 0 : index
    %c0_4 = arith.constant 0 : index
    %3 = vector.load %arg3[%c0_3, %c0_4] : memref<1x128xf32, #tpu.memory_space<vmem>>, vector<1x128xf32>
    %4 = vector.broadcast %3 : vector<1x128xf32> to vector<32x128xf32>
    %5 = arith.addf %2, %4 : vector<32x128xf32>
    %6 = arith.mulf %5, %5 : vector<32x128xf32>
    %cst_5 = arith.constant dense<0.000000e+00> : vector<32xf32>
    %7 = vector.multi_reduction <add>, %6, %cst_5 [1] : vector<32x128xf32> to vector<32xf32>
    %8 = vector.shape_cast %7 : vector<32xf32> to vector<32x1xf32>
    %cst_6 = arith.constant 1.000000e-24 : f32
    %9 = vector.broadcast %cst_6 : f32 to vector<32x1xf32>
    %10 = arith.maximumf %8, %9 : vector<32x1xf32>
    %11 = math.rsqrt %10 : vector<32x1xf32>
    %12 = vector.broadcast %11 : vector<32x1xf32> to vector<32x128xf32>
    %13 = arith.mulf %5, %12 : vector<32x128xf32>
    %14 = arith.truncf %13 : vector<32x128xf32> to vector<32x128xbf16>
    %c0_7 = arith.constant 0 : index
    %c0_8 = arith.constant 0 : index
    %15 = vector.load %arg4[%c0_7, %c0_8] : memref<32x128xbf16, #tpu.memory_space<vmem>>, vector<32x128xbf16>
    tpu.vector_store %arg4[%c0_7, %c0_8], %14 {strides = array<i32>} : memref<32x128xbf16, #tpu.memory_space<vmem>>, vector<32x128xbf16>,
    return
  }
  func.func @transform_0(%arg0: i32) -> (i32, i32) {
    %c0_i32 = arith.constant 0 : i32
    %c0_i32_0 = arith.constant 0 : i32
    return %arg0, %c0_i32 : i32, i32
  }
  func.func @transform_1(%arg0: i32) -> (i32, i32) {
    %c0_i32 = arith.constant 0 : i32
    %c0_i32_0 = arith.constant 0 : i32
    %c0_i32_1 = arith.constant 0 : i32
    return %c0_i32, %c0_i32_0 : i32, i32
  }
  func.func @transform_2(%arg0: i32) -> (i32, i32) {
    %c0_i32 = arith.constant 0 : i32
    %c0_i32_0 = arith.constant 0 : i32
    %c0_i32_1 = arith.constant 0 : i32
    return %c0_i32, %c0_i32_0 : i32, i32
  }
  func.func @transform_3(%arg0: i32) -> (i32, i32) {
    %c0_i32 = arith.constant 0 : i32
    %c0_i32_0 = arith.constant 0 : i32
    return %arg0, %c0_i32 : i32, i32
  }
}

</mosaic_0001>

<llo_original>
// kernel: tpu_custom_call.1
$region0: #{tpu_custom_call.1}
  #allocation0 [shape = 'u32[]', space=smem, size = 0x4, offset = 0x4, fixed_abs, tag = 'smem constant byte address 0x4 - core index']
  #allocation1 [shape = 'u32[72,128]{1,0:T(1,128)}', space=vmem, size = 0x9000, scoped, tag = 'internal scratch']
  %s0 = inlined_call_operand.hbm [shape: bf16[32,1024], index: 0, kind: input, shape index: {}]
  %s1 = inlined_call_operand.hbm [shape: bf16[1024,128], index: 1, kind: input, shape index: {}]
  %s2 = inlined_call_operand.vmem [shape: f32[1,128], index: 2, kind: input, shape index: {}]
  %s3 = inlined_call_operand.hbm [shape: bf16[32,128], index: 3, kind: output, shape index: {}]
  %s4 = sld [smem:[#allocation0]]
  $region30: #{tpu_custom_call.1} parent=0
    _
  %s6 = ssub.s32 1, %s4
  %s7 = scalar_select 0, %s6, %s4
  $region1: #{tpu_custom_call.1} parent=0
    #allocation2 [shape = 'u8[65536]{0}', space=vmem, size = 0x10000, scoped, tag = 'input window, operand 0, single buffered']
    #allocation3 [shape = 's32[1]{0}', space=sflag, size = 0x4, scoped, tag = 'scoped memory for tpu_custom_call.1']
    #allocation4 [shape = 's32[1]{0}', space=sflag, size = 0x4, scoped, tag = 'scoped memory for tpu_custom_call.1']
    #allocation5 [shape = 'u8[262144]{0}', space=vmem, size = 0x40000, scoped, tag = 'input window, operand 1, single buffered']
    #allocation6 [shape = 's32[1]{0}', space=sflag, size = 0x4, scoped, tag = 'scoped memory for tpu_custom_call.1']
    #allocation7 [shape = 'u8[8192]{0}', space=vmem, size = 0x2000, scoped, tag = 'output window, operand 0, single buffered']
    %8 = vsyncpa [#allocation3], 0
    %9 = vsyncpa [#allocation6], 0
    %10 = vsyncpa [#allocation4], 0
    // Predicated region
    $region2: #{tpu_custom_call.1} parent=1 // pred_check
      _
    $region3: #{tpu_custom_call.1} parent=1 // pred_check_branch
      %12 = sbr.rel (0) target = $region5
    $region4: #{tpu_custom_call.1} parent=1 // pred_region
      %14 = vsyncadd [#allocation3], 0
      %s15 = sshll.u32 %s0, 4
      %s16 = int_to_ptr.hbm [resolvable:$true] %s15
      %s17 = sshll.u32 [#allocation2], 4
      %s18 = int_to_ptr.vmem [resolvable:$true] %s17
      %23 = dma.hbm_to_vmem [thread:$0]  %s16, 2048, %s18, [#allocation3], 512, 512, 32
    $region5: #{tpu_custom_call.1} parent=1 // pred_fallthru
      _
    // Predicated region
    $region6: #{tpu_custom_call.1} parent=1 // pred_check
      _
    $region7: #{tpu_custom_call.1} parent=1 // pred_check_branch
      %25 = sbr.rel (0) target = $region9
    $region8: #{tpu_custom_call.1} parent=1 // pred_region
      %27 = vsyncadd [#allocation6], 0
      %s28 = sshll.u32 %s1, 4
      %s29 = int_to_ptr.hbm [resolvable:$true] %s28
      %s30 = sshll.u32 [#allocation5], 4
      %s31 = int_to_ptr.vmem [resolvable:$true] %s30
      %36 = dma.hbm_to_vmem [thread:$0]  %s29, 8192, %s31, [#allocation6], 64, 64, 4
    $region9: #{tpu_custom_call.1} parent=1 // pred_fallthru
      _
    // Predicated region
    $region10: #{tpu_custom_call.1} parent=1 // pred_check
      _
    $region11: #{tpu_custom_call.1} parent=1 // pred_check_branch
      %38 = sbr.rel (0) target = $region13
    $region12: #{tpu_custom_call.1} parent=1 // pred_region
      _
    $region13: #{tpu_custom_call.1} parent=1 // pred_fallthru
      _
    // Predicated region
    $region14: #{tpu_custom_call.1} parent=1 // pred_check
      _
    $region15: #{tpu_custom_call.1} parent=1 // pred_check_branch
      %40 = sbr.rel (0) target = $region17
    $region16: #{tpu_custom_call.1} parent=1 // pred_region
      %42 = dma.done [#allocation3], 2048
    $region17: #{tpu_custom_call.1} parent=1 // pred_fallthru
      _
    // Predicated region
    $region18: #{tpu_custom_call.1} parent=1 // pred_check
      _
    $region19: #{tpu_custom_call.1} parent=1 // pred_check_branch
      %44 = sbr.rel (0) target = $region21
    $region20: #{tpu_custom_call.1} parent=1 // pred_region
      %46 = dma.done [#allocation6], 8192
    $region21: #{tpu_custom_call.1} parent=1 // pred_fallthru
      _
    %v47 = vld [vmem:[#allocation2] sm:$0xff]
    %v48 = vld [vmem:[#allocation2 + $0x8] sm:$0xff]
    %v49 = vld [vmem:[#allocation2 + $0x10] sm:$0xff]
    %v50 = vld [vmem:[#allocation2 + $0x18] sm:$0xff]
    %v51 = vld [vmem:[#allocation2 + $0x20] sm:$0xff]
    %v52 = vld [vmem:[#allocation2 + $0x28] sm:$0xff]
    %v53 = vld [vmem:[#allocation2 + $0x30] sm:$0xff]
    %v54 = vld [vmem:[#allocation2 + $0x38] sm:$0xff]
    %v55 = vld [vmem:[#allocation2 + $0x40] sm:$0xff]
    %v56 = vld [vmem:[#allocation2 + $0x48] sm:$0xff]
    %v57 = vld [vmem:[#allocation2 + $0x50] sm:$0xff]
    %v58 = vld [vmem:[#allocation2 + $0x58] sm:$0xff]
    %v59 = vld [vmem:[#allocation2 + $0x60] sm:$0xff]
    %v60 = vld [vmem:[#allocation2 + $0x68] sm:$0xff]
    %v61 = vld [vmem:[#allocation2 + $0x70] sm:$0xff]
    %v62 = vld [vmem:[#allocation2 + $0x78] sm:$0xff]
    %v63 = vld [vmem:[#allocation5] sm:$0xf]
    %v64 = vld [vmem:[#allocation5 + $0x4] sm:$0xf]
    %v65 = vld [vmem:[#allocation5 + $0x8] sm:$0xf]
    %v66 = vld [vmem:[#allocation5 + $0xc] sm:$0xf]
    %v67 = vld [vmem:[#allocation5 + $0x10] sm:$0xf]
    %v68 = vld [vmem:[#allocation5 + $0x14] sm:$0xf]
    %v69 = vld [vmem:[#allocation5 + $0x18] sm:$0xf]
    %v70 = vld [vmem:[#allocation5 + $0x1c] sm:$0xf]
    %v71 = vld [vmem:[#allocation5 + $0x20] sm:$0xf]
    %v72 = vld [vmem:[#allocation5 + $0x24] sm:$0xf]
    %v73 = vld [vmem:[#allocation5 + $0x28] sm:$0xf]
    %v74 = vld [vmem:[#allocation5 + $0x2c] sm:$0xf]
    %v75 = vld [vmem:[#allocation5 + $0x30] sm:$0xf]
    %v76 = vld [vmem:[#allocation5 + $0x34] sm:$0xf]
    %v77 = vld [vmem:[#allocation5 + $0x38] sm:$0xf]
    %v78 = vld [vmem:[#allocation5 + $0x3c] sm:$0xf]
    %v79 = vld [vmem:[#allocation5 + $0x40] sm:$0xf]
    %v80 = vld [vmem:[#allocation5 + $0x44] sm:$0xf]
    %v81 = vld [vmem:[#allocation5 + $0x48] sm:$0xf]
    %v82 = vld [vmem:[#allocation5 + $0x4c] sm:$0xf]
    %v83 = vld [vmem:[#allocation5 + $0x50] sm:$0xf]
    %v84 = vld [vmem:[#allocation5 + $0x54] sm:$0xf]
    %v85 = vld [vmem:[#allocation5 + $0x58] sm:$0xf]
    %v86 = vld [vmem:[#allocation5 + $0x5c] sm:$0xf]
    %v87 = vld [vmem:[#allocation5 + $0x60] sm:$0xf]
    %v88 = vld [vmem:[#allocation5 + $0x64] sm:$0xf]
    %v89 = vld [vmem:[#allocation5 + $0x68] sm:$0xf]
    %v90 = vld [vmem:[#allocation5 + $0x6c] sm:$0xf]
    %v91 = vld [vmem:[#allocation5 + $0x70] sm:$0xf]
    %v92 = vld [vmem:[#allocation5 + $0x74] sm:$0xf]
    %v93 = vld [vmem:[#allocation5 + $0x78] sm:$0xf]
    %v94 = vld [vmem:[#allocation5 + $0x7c] sm:$0xf]
    %v95 = vld [vmem:[#allocation5 + $0x80] sm:$0xf]
    %v96 = vld [vmem:[#allocation5 + $0x84] sm:$0xf]
    %v97 = vld [vmem:[#allocation5 + $0x88] sm:$0xf]
    %v98 = vld [vmem:[#allocation5 + $0x8c] sm:$0xf]
    %v99 = vld [vmem:[#allocation5 + $0x90] sm:$0xf]
    %v100 = vld [vmem:[#allocation5 + $0x94] sm:$0xf]
    %v101 = vld [vmem:[#allocation5 + $0x98] sm:$0xf]
    %v102 = vld [vmem:[#allocation5 + $0x9c] sm:$0xf]
    %v103 = vld [vmem:[#allocation5 + $0xa0] sm:$0xf]
    %v104 = vld [vmem:[#allocation5 + $0xa4] sm:$0xf]
    %v105 = vld [vmem:[#allocation5 + $0xa8] sm:$0xf]
    %v106 = vld [vmem:[#allocation5 + $0xac] sm:$0xf]
    %v107 = vld [vmem:[#allocation5 + $0xb0] sm:$0xf]
    %v108 = vld [vmem:[#allocation5 + $0xb4] sm:$0xf]
    %v109 = vld [vmem:[#allocation5 + $0xb8] sm:$0xf]
    %v110 = vld [vmem:[#allocation5 + $0xbc] sm:$0xf]
    %v111 = vld [vmem:[#allocation5 + $0xc0] sm:$0xf]
    %v112 = vld [vmem:[#allocation5 + $0xc4] sm:$0xf]
    %v113 = vld [vmem:[#allocation5 + $0xc8] sm:$0xf]
    %v114 = vld [vmem:[#allocation5 + $0xcc] sm:$0xf]
    %v115 = vld [vmem:[#allocation5 + $0xd0] sm:$0xf]
    %v116 = vld [vmem:[#allocation5 + $0xd4] sm:$0xf]
    %v117 = vld [vmem:[#allocation5 + $0xd8] sm:$0xf]
    %v118 = vld [vmem:[#allocation5 + $0xdc] sm:$0xf]
    %v119 = vld [vmem:[#allocation5 + $0xe0] sm:$0xf]
    %v120 = vld [vmem:[#allocation5 + $0xe4] sm:$0xf]
    %v121 = vld [vmem:[#allocation5 + $0xe8] sm:$0xf]
    %v122 = vld [vmem:[#allocation5 + $0xec] sm:$0xf]
    %v123 = vld [vmem:[#allocation5 + $0xf0] sm:$0xf]
    %v124 = vld [vmem:[#allocation5 + $0xf4] sm:$0xf]
    %v125 = vld [vmem:[#allocation5 + $0xf8] sm:$0xf]
    %v126 = vld [vmem:[#allocation5 + $0xfc] sm:$0xf]
    %v127 = vld [vmem:[#allocation5 + $0x100] sm:$0xf]
    %v128 = vld [vmem:[#allocation5 + $0x104] sm:$0xf]
    %v129 = vld [vmem:[#allocation5 + $0x108] sm:$0xf]
    %v130 = vld [vmem:[#allocation5 + $0x10c] sm:$0xf]
    %v131 = vld [vmem:[#allocation5 + $0x110] sm:$0xf]
    %v132 = vld [vmem:[#allocation5 + $0x114] sm:$0xf]
    %v133 = vld [vmem:[#allocation5 + $0x118] sm:$0xf]
    %v134 = vld [vmem:[#allocation5 + $0x11c] sm:$0xf]
    %v135 = vld [vmem:[#allocation5 + $0x120] sm:$0xf]
    %v136 = vld [vmem:[#allocation5 + $0x124] sm:$0xf]
    %v137 = vld [vmem:[#allocation5 + $0x128] sm:$0xf]
    %v138 = vld [vmem:[#allocation5 + $0x12c] sm:$0xf]
    %v139 = vld [vmem:[#allocation5 + $0x130] sm:$0xf]
    %v140 = vld [vmem:[#allocation5 + $0x134] sm:$0xf]
    %v141 = vld [vmem:[#allocation5 + $0x138] sm:$0xf]
    %v142 = vld [vmem:[#allocation5 + $0x13c] sm:$0xf]
    %v143 = vld [vmem:[#allocation5 + $0x140] sm:$0xf]
    %v144 = vld [vmem:[#allocation5 + $0x144] sm:$0xf]
    %v145 = vld [vmem:[#allocation5 + $0x148] sm:$0xf]
    %v146 = vld [vmem:[#allocation5 + $0x14c] sm:$0xf]
    %v147 = vld [vmem:[#allocation5 + $0x150] sm:$0xf]
    %v148 = vld [vmem:[#allocation5 + $0x154] sm:$0xf]
    %v149 = vld [vmem:[#allocation5 + $0x158] sm:$0xf]
    %v150 = vld [vmem:[#allocation5 + $0x15c] sm:$0xf]
    %v151 = vld [vmem:[#allocation5 + $0x160] sm:$0xf]
    %v152 = vld [vmem:[#allocation5 + $0x164] sm:$0xf]
    %v153 = vld [vmem:[#allocation5 + $0x168] sm:$0xf]
    %v154 = vld [vmem:[#allocation5 + $0x16c] sm:$0xf]
    %v155 = vld [vmem:[#allocation5 + $0x170] sm:$0xf]
    %v156 = vld [vmem:[#allocation5 + $0x174] sm:$0xf]
    %v157 = vld [vmem:[#allocation5 + $0x178] sm:$0xf]
    %v158 = vld [vmem:[#allocation5 + $0x17c] sm:$0xf]
    %v159 = vld [vmem:[#allocation5 + $0x180] sm:$0xf]
    %v160 = vld [vmem:[#allocation5 + $0x184] sm:$0xf]
    %v161 = vld [vmem:[#allocation5 + $0x188] sm:$0xf]
    %v162 = vld [vmem:[#allocation5 + $0x18c] sm:$0xf]
    %v163 = vld [vmem:[#allocation5 + $0x190] sm:$0xf]
    %v164 = vld [vmem:[#allocation5 + $0x194] sm:$0xf]
    %v165 = vld [vmem:[#allocation5 + $0x198] sm:$0xf]
    %v166 = vld [vmem:[#allocation5 + $0x19c] sm:$0xf]
    %v167 = vld [vmem:[#allocation5 + $0x1a0] sm:$0xf]
    %v168 = vld [vmem:[#allocation5 + $0x1a4] sm:$0xf]
    %v169 = vld [vmem:[#allocation5 + $0x1a8] sm:$0xf]
    %v170 = vld [vmem:[#allocation5 + $0x1ac] sm:$0xf]
    %v171 = vld [vmem:[#allocation5 + $0x1b0] sm:$0xf]
    %v172 = vld [vmem:[#allocation5 + $0x1b4] sm:$0xf]
    %v173 = vld [vmem:[#allocation5 + $0x1b8] sm:$0xf]
    %v174 = vld [vmem:[#allocation5 + $0x1bc] sm:$0xf]
    %v175 = vld [vmem:[#allocation5 + $0x1c0] sm:$0xf]
    %v176 = vld [vmem:[#allocation5 + $0x1c4] sm:$0xf]
    %v177 = vld [vmem:[#allocation5 + $0x1c8] sm:$0xf]
    %v178 = vld [vmem:[#allocation5 + $0x1cc] sm:$0xf]
    %v179 = vld [vmem:[#allocation5 + $0x1d0] sm:$0xf]
    %v180 = vld [vmem:[#allocation5 + $0x1d4] sm:$0xf]
    %v181 = vld [vmem:[#allocation5 + $0x1d8] sm:$0xf]
    %v182 = vld [vmem:[#allocation5 + $0x1dc] sm:$0xf]
    %v183 = vld [vmem:[#allocation5 + $0x1e0] sm:$0xf]
    %v184 = vld [vmem:[#allocation5 + $0x1e4] sm:$0xf]
    %v185 = vld [vmem:[#allocation5 + $0x1e8] sm:$0xf]
    %v186 = vld [vmem:[#allocation5 + $0x1ec] sm:$0xf]
    %v187 = vld [vmem:[#allocation5 + $0x1f0] sm:$0xf]
    %v188 = vld [vmem:[#allocation5 + $0x1f4] sm:$0xf]
    %v189 = vld [vmem:[#allocation5 + $0x1f8] sm:$0xf]
    %v190 = vld [vmem:[#allocation5 + $0x1fc] sm:$0xf]
    %v191 = vld [vmem:[%s2] sm:$0x1]
    %v193 = vperm.slane %v191, 0
    %v211 = vunpack.c.l.b16 %v47
    %v212 = vunpack.c.h.b16 %v47
    %v213 = vunpack.c.l.b16 %v48
    %v214 = vunpack.c.h.b16 %v48
    %v215 = vunpack.c.l.b16 %v49
    %v216 = vunpack.c.h.b16 %v49
    %v217 = vunpack.c.l.b16 %v50
    %v218 = vunpack.c.h.b16 %v50
    %v219 = vunpack.c.l.b16 %v51
    %v220 = vunpack.c.h.b16 %v51
    %v221 = vunpack.c.l.b16 %v52
    %v222 = vunpack.c.h.b16 %v52
    %v223 = vunpack.c.l.b16 %v53
    %v224 = vunpack.c.h.b16 %v53
    %v225 = vunpack.c.l.b16 %v54
    %v226 = vunpack.c.h.b16 %v54
    %v227 = vunpack.c.l.b16 %v55
    %v228 = vunpack.c.h.b16 %v55
    %v229 = vunpack.c.l.b16 %v56
    %v230 = vunpack.c.h.b16 %v56
    %v231 = vunpack.c.l.b16 %v57
    %v232 = vunpack.c.h.b16 %v57
    %v233 = vunpack.c.l.b16 %v58
    %v234 = vunpack.c.h.b16 %v58
    %v235 = vunpack.c.l.b16 %v59
    %v236 = vunpack.c.h.b16 %v59
    %v237 = vunpack.c.l.b16 %v60
    %v238 = vunpack.c.h.b16 %v60
    %v239 = vunpack.c.l.b16 %v61
    %v240 = vunpack.c.h.b16 %v61
    %v241 = vunpack.c.l.b16 %v62
    %v242 = vunpack.c.h.b16 %v62
    %v243 = vpack.c.b16 %v219, %v211
    %v244 = vpack.c.b16 %v220, %v212
    %v245 = vpack.c.b16 %v221, %v213
    %v246 = vpack.c.b16 %v222, %v214
    %v247 = vpack.c.b16 %v223, %v215
    %v248 = vpack.c.b16 %v224, %v216
    %v249 = vpack.c.b16 %v225, %v217
    %v250 = vpack.c.b16 %v226, %v218
    %v251 = vpack.c.b16 %v235, %v227
    %v252 = vpack.c.b16 %v236, %v228
    %v253 = vpack.c.b16 %v237, %v229
    %v254 = vpack.c.b16 %v238, %v230
    %v255 = vpack.c.b16 %v239, %v231
    %v256 = vpack.c.b16 %v240, %v232
    %v257 = vpack.c.b16 %v241, %v233
    %v258 = vpack.c.b16 %v242, %v234
    %v403 = vunpack.c.l.b16 %v63
    %v404 = vunpack.c.l.b16 %v64
    %v405 = vunpack.c.l.b16 %v65
    %v406 = vunpack.c.l.b16 %v66
    %v407 = vunpack.c.l.b16 %v67
    %v408 = vunpack.c.l.b16 %v68
    %v409 = vunpack.c.l.b16 %v69
    %v410 = vunpack.c.l.b16 %v70
    %v411 = vunpack.c.l.b16 %v71
    %v412 = vunpack.c.l.b16 %v72
    %v413 = vunpack.c.l.b16 %v73
    %v414 = vunpack.c.l.b16 %v74
    %v415 = vunpack.c.l.b16 %v75
    %v416 = vunpack.c.l.b16 %v76
    %v417 = vunpack.c.l.b16 %v77
    %v418 = vunpack.c.l.b16 %v78
    %v419 = vunpack.c.l.b16 %v79
    %v420 = vunpack.c.l.b16 %v80
    %v421 = vunpack.c.l.b16 %v81
    %v422 = vunpack.c.l.b16 %v82
    %v423 = vunpack.c.l.b16 %v83
    %v424 = vunpack.c.l.b16 %v84
    %v425 = vunpack.c.l.b16 %v85
    %v426 = vunpack.c.l.b16 %v86
    %v427 = vunpack.c.l.b16 %v87
    %v428 = vunpack.c.l.b16 %v88
    %v429 = vunpack.c.l.b16 %v89
    %v430 = vunpack.c.l.b16 %v90
    %v431 = vunpack.c.l.b16 %v91
    %v432 = vunpack.c.l.b16 %v92
    %v433 = vunpack.c.l.b16 %v93
    %v434 = vunpack.c.l.b16 %v94
    %v435 = vunpack.c.l.b16 %v95
    %v436 = vunpack.c.l.b16 %v96
    %v437 = vunpack.c.l.b16 %v97
    %v438 = vunpack.c.l.b16 %v98
    %v439 = vunpack.c.l.b16 %v99
    %v440 = vunpack.c.l.b16 %v100
    %v441 = vunpack.c.l.b16 %v101
    %v442 = vunpack.c.l.b16 %v102
    %v443 = vunpack.c.l.b16 %v103
    %v444 = vunpack.c.l.b16 %v104
    %v445 = vunpack.c.l.b16 %v105
    %v446 = vunpack.c.l.b16 %v106
    %v447 = vunpack.c.l.b16 %v107
    %v448 = vunpack.c.l.b16 %v108
    %v449 = vunpack.c.l.b16 %v109
    %v450 = vunpack.c.l.b16 %v110
    %v451 = vunpack.c.l.b16 %v111
    %v452 = vunpack.c.l.b16 %v112
    %v453 = vunpack.c.l.b16 %v113
    %v454 = vunpack.c.l.b16 %v114
    %v455 = vunpack.c.l.b16 %v115
    %v456 = vunpack.c.l.b16 %v116
    %v457 = vunpack.c.l.b16 %v117
    %v458 = vunpack.c.l.b16 %v118
    %v459 = vunpack.c.l.b16 %v119
    %v460 = vunpack.c.l.b16 %v120
    %v461 = vunpack.c.l.b16 %v121
    %v462 = vunpack.c.l.b16 %v122
    %v463 = vunpack.c.l.b16 %v123
    %v464 = vunpack.c.l.b16 %v124
    %v465 = vunpack.c.l.b16 %v125
    %v466 = vunpack.c.l.b16 %v126
    %v467 = vunpack.c.l.b16 %v127
    %v468 = vunpack.c.l.b16 %v128
    %v469 = vunpack.c.l.b16 %v129
    %v470 = vunpack.c.l.b16 %v130
    %v471 = vunpack.c.l.b16 %v131
    %v472 = vunpack.c.l.b16 %v132
    %v473 = vunpack.c.l.b16 %v133
    %v474 = vunpack.c.l.b16 %v134
    %v475 = vunpack.c.l.b16 %v135
    %v476 = vunpack.c.l.b16 %v136
    %v477 = vunpack.c.l.b16 %v137
    %v478 = vunpack.c.l.b16 %v138
    %v479 = vunpack.c.l.b16 %v139
    %v480 = vunpack.c.l.b16 %v140
    %v481 = vunpack.c.l.b16 %v141
    %v482 = vunpack.c.l.b16 %v142
    %v483 = vunpack.c.l.b16 %v143
    %v484 = vunpack.c.l.b16 %v144
    %v485 = vunpack.c.l.b16 %v145
    %v486 = vunpack.c.l.b16 %v146
    %v487 = vunpack.c.l.b16 %v147
    %v488 = vunpack.c.l.b16 %v148
    %v489 = vunpack.c.l.b16 %v149
    %v490 = vunpack.c.l.b16 %v150
    %v491 = vunpack.c.l.b16 %v151
    %v492 = vunpack.c.l.b16 %v152
    %v493 = vunpack.c.l.b16 %v153
    %v494 = vunpack.c.l.b16 %v154
    %v495 = vunpack.c.l.b16 %v155
    %v496 = vunpack.c.l.b16 %v156
    %v497 = vunpack.c.l.b16 %v157
    %v498 = vunpack.c.l.b16 %v158
    %v499 = vunpack.c.l.b16 %v159
    %v500 = vunpack.c.l.b16 %v160
    %v501 = vunpack.c.l.b16 %v161
    %v502 = vunpack.c.l.b16 %v162
    %v503 = vunpack.c.l.b16 %v163
    %v504 = vunpack.c.l.b16 %v164
    %v505 = vunpack.c.l.b16 %v165
    %v506 = vunpack.c.l.b16 %v166
    %v507 = vunpack.c.l.b16 %v167
    %v508 = vunpack.c.l.b16 %v168
    %v509 = vunpack.c.l.b16 %v169
    %v510 = vunpack.c.l.b16 %v170
    %v511 = vunpack.c.l.b16 %v171
    %v512 = vunpack.c.l.b16 %v172
    %v513 = vunpack.c.l.b16 %v173
    %v514 = vunpack.c.l.b16 %v174
    %v515 = vunpack.c.l.b16 %v175
    %v516 = vunpack.c.l.b16 %v176
    %v517 = vunpack.c.l.b16 %v177
    %v518 = vunpack.c.l.b16 %v178
    %v519 = vunpack.c.l.b16 %v179
    %v520 = vunpack.c.l.b16 %v180
    %v521 = vunpack.c.l.b16 %v181
    %v522 = vunpack.c.l.b16 %v182
    %v523 = vunpack.c.l.b16 %v183
    %v524 = vunpack.c.l.b16 %v184
    %v525 = vunpack.c.l.b16 %v185
    %v526 = vunpack.c.l.b16 %v186
    %v527 = vunpack.c.l.b16 %v187
    %v528 = vunpack.c.l.b16 %v188
    %v529 = vunpack.c.l.b16 %v189
    %v530 = vunpack.c.l.b16 %v190
    %v531 = vpack.c.b16 %v404, %v403
    %v532 = vpack.c.b16 %v406, %v405
    %v533 = vpack.c.b16 %v408, %v407
    %v534 = vpack.c.b16 %v410, %v409
    %v535 = vpack.c.b16 %v412, %v411
    %v536 = vpack.c.b16 %v414, %v413
    %v537 = vpack.c.b16 %v416, %v415
    %v538 = vpack.c.b16 %v418, %v417
    %v539 = vpack.c.b16 %v420, %v419
    %v540 = vpack.c.b16 %v422, %v421
    %v541 = vpack.c.b16 %v424, %v423
    %v542 = vpack.c.b16 %v426, %v425
    %v543 = vpack.c.b16 %v428, %v427
    %v544 = vpack.c.b16 %v430, %v429
    %v545 = vpack.c.b16 %v432, %v431
    %v546 = vpack.c.b16 %v434, %v433
    %v547 = vpack.c.b16 %v436, %v435
    %v548 = vpack.c.b16 %v438, %v437
    %v549 = vpack.c.b16 %v440, %v439
    %v550 = vpack.c.b16 %v442, %v441
    %v551 = vpack.c.b16 %v444, %v443
    %v552 = vpack.c.b16 %v446, %v445
    %v553 = vpack.c.b16 %v448, %v447
    %v554 = vpack.c.b16 %v450, %v449
    %v555 = vpack.c.b16 %v452, %v451
    %v556 = vpack.c.b16 %v454, %v453
    %v557 = vpack.c.b16 %v456, %v455
    %v558 = vpack.c.b16 %v458, %v457
    %v559 = vpack.c.b16 %v460, %v459
    %v560 = vpack.c.b16 %v462, %v461
    %v561 = vpack.c.b16 %v464, %v463
    %v562 = vpack.c.b16 %v466, %v465
    %v563 = vpack.c.b16 %v468, %v467
    %v564 = vpack.c.b16 %v470, %v469
    %v565 = vpack.c.b16 %v472, %v471
    %v566 = vpack.c.b16 %v474, %v473
    %v567 = vpack.c.b16 %v476, %v475
    %v568 = vpack.c.b16 %v478, %v477
    %v569 = vpack.c.b16 %v480, %v479
    %v570 = vpack.c.b16 %v482, %v481
    %v571 = vpack.c.b16 %v484, %v483
    %v572 = vpack.c.b16 %v486, %v485
    %v573 = vpack.c.b16 %v488, %v487
    %v574 = vpack.c.b16 %v490, %v489
    %v575 = vpack.c.b16 %v492, %v491
    %v576 = vpack.c.b16 %v494, %v493
    %v577 = vpack.c.b16 %v496, %v495
    %v578 = vpack.c.b16 %v498, %v497
    %v579 = vpack.c.b16 %v500, %v499
    %v580 = vpack.c.b16 %v502, %v501
    %v581 = vpack.c.b16 %v504, %v503
    %v582 = vpack.c.b16 %v506, %v505
    %v583 = vpack.c.b16 %v508, %v507
    %v584 = vpack.c.b16 %v510, %v509
    %v585 = vpack.c.b16 %v512, %v511
    %v586 = vpack.c.b16 %v514, %v513
    %v587 = vpack.c.b16 %v516, %v515
    %v588 = vpack.c.b16 %v518, %v517
    %v589 = vpack.c.b16 %v520, %v519
    %v590 = vpack.c.b16 %v522, %v521
    %v591 = vpack.c.b16 %v524, %v523
    %v592 = vpack.c.b16 %v526, %v525
    %v593 = vpack.c.b16 %v528, %v527
    %v594 = vpack.c.b16 %v530, %v529
    %659 = vmatpush.bf16.msra.mxu0 %v538
    %660 = vmatpush.bf16.msra.mxu0 %v537
    %661 = vmatpush.bf16.msra.mxu0 %v536
    %662 = vmatpush.bf16.msra.mxu0 %v535
    %663 = vmatpush.bf16.msra.mxu0 %v534
    %664 = vmatpush.bf16.msra.mxu0 %v533
    %665 = vmatpush.bf16.msra.mxu0 %v532
    %666 = vmatpush.bf16.msra.mxu0 %v531
    %667 = vmatmul.bf16.gmra.mxu0 %v243
    %v668 = vpop.f32.mrf.mxu0
    %v669 = vadd.f32 %v193, %v668
    %v670 = vpop.f32.mrf.mxu0
    %v671 = vadd.f32 %v193, %v670
    %672 = vmatmul.bf16.gmra.mxu0 %v251
    %v673 = vpop.f32.mrf.mxu0
    %v674 = vadd.f32 %v193, %v673
    %v675 = vpop.f32.mrf.mxu0
    %v676 = vadd.f32 %v193, %v675
    %677 = vdwg.mxu0
    %678 = vmatpush.bf16.msra.mxu0 %v546
    %679 = vmatpush.bf16.msra.mxu0 %v545
    %680 = vmatpush.bf16.msra.mxu0 %v544
    %681 = vmatpush.bf16.msra.mxu0 %v543
    %682 = vmatpush.bf16.msra.mxu0 %v542
    %683 = vmatpush.bf16.msra.mxu0 %v541
    %684 = vmatpush.bf16.msra.mxu0 %v540
    %685 = vmatpush.bf16.msra.mxu0 %v539
    %686 = vmatmul.bf16.gmra.mxu0 %v244
    %v687 = vpop.f32.mrf.mxu0
    %v688 = vadd.f32 %v669, %v687
    %v689 = vpop.f32.mrf.mxu0
    %v690 = vadd.f32 %v671, %v689
    %691 = vmatmul.bf16.gmra.mxu0 %v252
    %v692 = vpop.f32.mrf.mxu0
    %v693 = vadd.f32 %v674, %v692
    %v694 = vpop.f32.mrf.mxu0
    %v695 = vadd.f32 %v676, %v694
    %696 = vdwg.mxu0
    %697 = vmatpush.bf16.msra.mxu0 %v554
    %698 = vmatpush.bf16.msra.mxu0 %v553
    %699 = vmatpush.bf16.msra.mxu0 %v552
    %700 = vmatpush.bf16.msra.mxu0 %v551
    %701 = vmatpush.bf16.msra.mxu0 %v550
    %702 = vmatpush.bf16.msra.mxu0 %v549
    %703 = vmatpush.bf16.msra.mxu0 %v548
    %704 = vmatpush.bf16.msra.mxu0 %v547
    %705 = vmatmul.bf16.gmra.mxu0 %v245
    %v706 = vpop.f32.mrf.mxu0
    %v707 = vadd.f32 %v688, %v706
    %v708 = vpop.f32.mrf.mxu0
    %v709 = vadd.f32 %v690, %v708
    %710 = vmatmul.bf16.gmra.mxu0 %v253
    %v711 = vpop.f32.mrf.mxu0
    %v712 = vadd.f32 %v693, %v711
    %v713 = vpop.f32.mrf.mxu0
    %v714 = vadd.f32 %v695, %v713
    %715 = vdwg.mxu0
    %716 = vmatpush.bf16.msra.mxu0 %v562
    %717 = vmatpush.bf16.msra.mxu0 %v561
    %718 = vmatpush.bf16.msra.mxu0 %v560
    %719 = vmatpush.bf16.msra.mxu0 %v559
    %720 = vmatpush.bf16.msra.mxu0 %v558
    %721 = vmatpush.bf16.msra.mxu0 %v557
    %722 = vmatpush.bf16.msra.mxu0 %v556
    %723 = vmatpush.bf16.msra.mxu0 %v555
    %724 = vmatmul.bf16.gmra.mxu0 %v246
    %v725 = vpop.f32.mrf.mxu0
    %v726 = vadd.f32 %v707, %v725
    %v727 = vpop.f32.mrf.mxu0
    %v728 = vadd.f32 %v709, %v727
    %729 = vmatmul.bf16.gmra.mxu0 %v254
    %v730 = vpop.f32.mrf.mxu0
    %v731 = vadd.f32 %v712, %v730
    %v732 = vpop.f32.mrf.mxu0
    %v733 = vadd.f32 %v714, %v732
    %734 = vdwg.mxu0
    %735 = vmatpush.bf16.msra.mxu0 %v570
    %736 = vmatpush.bf16.msra.mxu0 %v569
    %737 = vmatpush.bf16.msra.mxu0 %v568
    %738 = vmatpush.bf16.msra.mxu0 %v567
    %739 = vmatpush.bf16.msra.mxu0 %v566
    %740 = vmatpush.bf16.msra.mxu0 %v565
    %741 = vmatpush.bf16.msra.mxu0 %v564
    %742 = vmatpush.bf16.msra.mxu0 %v563
    %743 = vmatmul.bf16.gmra.mxu0 %v247
    %v744 = vpop.f32.mrf.mxu0
    %v745 = vadd.f32 %v726, %v744
    %v746 = vpop.f32.mrf.mxu0
    %v747 = vadd.f32 %v728, %v746
    %748 = vmatmul.bf16.gmra.mxu0 %v255
    %v749 = vpop.f32.mrf.mxu0
    %v750 = vadd.f32 %v731, %v749
    %v751 = vpop.f32.mrf.mxu0
    %v752 = vadd.f32 %v733, %v751
    %753 = vdwg.mxu0
    %754 = vmatpush.bf16.msra.mxu0 %v578
    %755 = vmatpush.bf16.msra.mxu0 %v577
    %756 = vmatpush.bf16.msra.mxu0 %v576
    %757 = vmatpush.bf16.msra.mxu0 %v575
    %758 = vmatpush.bf16.msra.mxu0 %v574
    %759 = vmatpush.bf16.msra.mxu0 %v573
    %760 = vmatpush.bf16.msra.mxu0 %v572
    %761 = vmatpush.bf16.msra.mxu0 %v571
    %762 = vmatmul.bf16.gmra.mxu0 %v248
    %v763 = vpop.f32.mrf.mxu0
    %v764 = vadd.f32 %v745, %v763
    %v765 = vpop.f32.mrf.mxu0
    %v766 = vadd.f32 %v747, %v765
    %767 = vmatmul.bf16.gmra.mxu0 %v256
    %v768 = vpop.f32.mrf.mxu0
    %v769 = vadd.f32 %v750, %v768
    %v770 = vpop.f32.mrf.mxu0
    %v771 = vadd.f32 %v752, %v770
    %772 = vdwg.mxu0
    %773 = vmatpush.bf16.msra.mxu0 %v586
    %774 = vmatpush.bf16.msra.mxu0 %v585
    %775 = vmatpush.bf16.msra.mxu0 %v584
    %776 = vmatpush.bf16.msra.mxu0 %v583
    %777 = vmatpush.bf16.msra.mxu0 %v582
    %778 = vmatpush.bf16.msra.mxu0 %v581
    %779 = vmatpush.bf16.msra.mxu0 %v580
    %780 = vmatpush.bf16.msra.mxu0 %v579
    %781 = vmatmul.bf16.gmra.mxu0 %v249
    %v782 = vpop.f32.mrf.mxu0
    %v783 = vadd.f32 %v764, %v782
    %v784 = vpop.f32.mrf.mxu0
    %v785 = vadd.f32 %v766, %v784
    %786 = vmatmul.bf16.gmra.mxu0 %v257
    %v787 = vpop.f32.mrf.mxu0
    %v788 = vadd.f32 %v769, %v787
    %v789 = vpop.f32.mrf.mxu0
    %v790 = vadd.f32 %v771, %v789
    %791 = vdwg.mxu0
    %792 = vmatpush.bf16.msra.mxu0 %v594
    %793 = vmatpush.bf16.msra.mxu0 %v593
    %794 = vmatpush.bf16.msra.mxu0 %v592
    %795 = vmatpush.bf16.msra.mxu0 %v591
    %796 = vmatpush.bf16.msra.mxu0 %v590
    %797 = vmatpush.bf16.msra.mxu0 %v589
    %798 = vmatpush.bf16.msra.mxu0 %v588
    %799 = vmatpush.bf16.msra.mxu0 %v587
    %800 = vmatmul.bf16.gmra.mxu0 %v250
    %v801 = vpop.f32.mrf.mxu0
    %v802 = vadd.f32 %v783, %v801
    %v803 = vpop.f32.mrf.mxu0
    %v804 = vadd.f32 %v785, %v803
    %805 = vmatmul.bf16.gmra.mxu0 %v258
    %v806 = vpop.f32.mrf.mxu0
    %v807 = vadd.f32 %v788, %v806
    %v808 = vpop.f32.mrf.mxu0
    %v809 = vadd.f32 %v790, %v808
    %810 = vdwg.mxu0
    %v811 = vmul.f32 %v802, %v802
    %v812 = vmul.f32 %v804, %v804
    %v813 = vmul.f32 %v807, %v807
    %v814 = vmul.f32 %v809, %v809
    %815 = vadd.xlane.f32.xlu0 %v811
    %v816 = vpop.xlane.xlu0 %815
    %817 = vadd.xlane.f32.xlu0 %v812
    %v818 = vpop.xlane.xlu0 %817
    %819 = vadd.xlane.f32.xlu0 %v813
    %v820 = vpop.xlane.xlu0 %819
    %821 = vadd.xlane.f32.xlu0 %v814
    %v822 = vpop.xlane.xlu0 %821
    %v823 = vmax.f32 %v816, 1e-24
    %v824 = vmax.f32 %v818, 1e-24
    %v825 = vmax.f32 %v820, 1e-24
    %v826 = vmax.f32 %v822, 1e-24
    %v827 = vrsqrt.pop %v823
    %v828 = vmul.f32 %v827, %v823
    %v829 = vmul.f32 %v828, %v827
    %v830 = vmul.f32 0.5, %v829
    %v831 = vsub.f32 1.5, %v830
    %v832 = vmul.f32 %v827, %v831
    %vm833 = vweird.f32 %v823
    %vm834 = vweird.f32 %v827
    %vm835 = vmor %vm833, %vm834
    %v836 = vsel %vm835, %v827, %v832
    %v837 = vrsqrt.pop %v824
    %v838 = vmul.f32 %v837, %v824
    %v839 = vmul.f32 %v838, %v837
    %v840 = vmul.f32 0.5, %v839
    %v841 = vsub.f32 1.5, %v840
    %v842 = vmul.f32 %v837, %v841
    %vm843 = vweird.f32 %v824
    %vm844 = vweird.f32 %v837
    %vm845 = vmor %vm843, %vm844
    %v846 = vsel %vm845, %v837, %v842
    %v847 = vrsqrt.pop %v825
    %v848 = vmul.f32 %v847, %v825
    %v849 = vmul.f32 %v848, %v847
    %v850 = vmul.f32 0.5, %v849
    %v851 = vsub.f32 1.5, %v850
    %v852 = vmul.f32 %v847, %v851
    %vm853 = vweird.f32 %v825
    %vm854 = vweird.f32 %v847
    %vm855 = vmor %vm853, %vm854
    %v856 = vsel %vm855, %v847, %v852
    %v857 = vrsqrt.pop %v826
    %v858 = vmul.f32 %v857, %v826
    %v859 = vmul.f32 %v858, %v857
    %v860 = vmul.f32 0.5, %v859
    %v861 = vsub.f32 1.5, %v860
    %v862 = vmul.f32 %v857, %v861
    %vm863 = vweird.f32 %v826
    %vm864 = vweird.f32 %v857
    %vm865 = vmor %vm863, %vm864
    %v866 = vsel %vm865, %v857, %v862
    %v867 = vmul.f32 %v802, %v836
    %v868 = vmul.f32 %v804, %v846
    %v869 = vmul.f32 %v807, %v856
    %v870 = vmul.f32 %v809, %v866
    %v871 = vpack.c.bf16 %v867, %v867
    %v872 = vpack.c.bf16 %v868, %v868
    %v873 = vpack.c.bf16 %v869, %v869
    %v874 = vpack.c.bf16 %v870, %v870
    %875 = vst [vmem:[#allocation7] sm:$0xf] %v871
    %876 = vst [vmem:[#allocation7 + $0x4] sm:$0xf] %v872
    %877 = vst [vmem:[#allocation7 + $0x8] sm:$0xf] %v873
    %878 = vst [vmem:[#allocation7 + $0xc] sm:$0xf] %v874
    // Predicated region
    $region22: #{tpu_custom_call.1} parent=1 // pred_check
      _
    $region23: #{tpu_custom_call.1} parent=1 // pred_check_branch
      %880 = sbr.rel (0) target = $region25
    $region24: #{tpu_custom_call.1} parent=1 // pred_region
      %882 = vsyncadd [#allocation4], 0
      %s883 = sshll.u32 [#allocation7], 4
      %s884 = int_to_ptr.vmem [resolvable:$true] %s883
      %s885 = sshll.u32 %s3, 4
      %s886 = int_to_ptr.hbm [resolvable:$true] %s885
      %891 = dma.vmem_to_hbm [thread:$0]  %s884, 256, %s886, [#allocation4], 64, 64, 4
    $region25: #{tpu_custom_call.1} parent=1 // pred_fallthru
      _
    // Predicated region
    $region26: #{tpu_custom_call.1} parent=1 // pred_check
      _
    $region27: #{tpu_custom_call.1} parent=1 // pred_check_branch
      %893 = sbr.rel (0) target = $region29
    $region28: #{tpu_custom_call.1} parent=1 // pred_region
      %895 = dma.done [#allocation4], 256
    $region29: #{tpu_custom_call.1} parent=1 // pred_fallthru
      _
    %896 = vsyncpa [#allocation3], 1
    %897 = vsyncpa [#allocation6], 1
    %898 = vsyncpa [#allocation4], 1

</llo_original>
